<compile_context>
chip_gen: v7x
topology: tpu7x:2x2x1
jax: 0.10.0
libtpu: 0.0.40
codegen_flags: <defaults>
</compile_context>

<pallas_src>
import functools

import jax
import jax.numpy as jnp
from jax.experimental import pallas as pl
from jax.experimental.pallas import tpu as pltpu


def _vmem():
    return pl.BlockSpec(memory_space=pltpu.MemorySpace.VMEM)


# ------------------------------ fused COV kernel -------------------------------
def cov_fused_kernel(x_ref, eps_ref, p_ref, enc_ref, dec_ref,
                     *, layout, z_dim, x_dim):
    f32 = jnp.float32

    def view(name):
        r, rows, cols = layout[name]          # static Python ints -> zero-cost view
        return p_ref[r:r + rows, 0:cols]

    # ---- encoder MLP (fused mu/std head: one (h, 2z) matmul) ----
    x = x_ref[...]                                                      # (n, x_dim)
    h1 = jnp.tanh(jnp.dot(x, view("ew1"), preferred_element_type=f32) + view("eb1"))
    h2 = jnp.tanh(jnp.dot(h1, view("ew2"), preferred_element_type=f32) + view("eb2"))
    head = jnp.dot(h2, view("ewh"), preferred_element_type=f32) + view("ebh")  # (n, 2z)

    mu = head[:, :z_dim]                                                # (n, z)
    std = jnp.exp(head[:, z_dim:])          # exp once per distinct batch row
    logvar = jnp.log(std * std + 1e-18)
    enc_ref[...] = jnp.concatenate([mu, logvar], axis=1)   # single (n, 2z) store

    # ---- per-sample broadcast AFTER the exp via precomputed one-hot rep ----
    ms = jnp.concatenate([mu, std], axis=1)                             # (n, 2z)
    ms_bc = jnp.dot(view("rep"), ms, preferred_element_type=f32)        # (n*S, 2z)
    mu_bc = ms_bc[:, :z_dim]
    std_bc = ms_bc[:, z_dim:]

    # B (row-normalized identity, kron with eye(1)) => L @ eps == std * eps.
    samples = mu_bc + std_bc * eps_ref[...]                             # (n*S, z)

    # ---- decoder MLP on the flat (n*S, z) samples ----
    d1 = jnp.tanh(jnp.dot(samples, view("dw1"), preferred_element_type=f32) + view("db1"))
    d2 = jnp.tanh(jnp.dot(d1, view("dw2"), preferred_element_type=f32) + view("db2"))
    recon = jax.nn.sigmoid(
        jnp.dot(d2, view("dw3"), preferred_element_type=f32) + view("db3"))

    # single (n*S, x_dim + z_dim) store: [recon | samples]
    dec_ref[...] = jnp.concatenate([recon, samples], axis=1)


# ---------------------------------- wrapper ------------------------------------
def cov_forward(x, packed_params, layout, eps, *, x_dim, z_dim, num_samples):
    xf = x.reshape(-1, x_dim)
    n = xf.shape[0]
    ns = n * num_samples
    # eps arrives as (n, num_samples*z_dim) row-major -> sample-major flat (n*S, z)
    eps_flat = eps.reshape(ns, z_dim)

    kernel = functools.partial(cov_fused_kernel, layout=layout,
                               z_dim=z_dim, x_dim=x_dim)

    enc_out, dec_out = pl.pallas_call(
        kernel,
        out_shape=(
            jax.ShapeDtypeStruct((n, 2 * z_dim), jnp.float32),        # [mu | logvar]
            jax.ShapeDtypeStruct((ns, x_dim + z_dim), jnp.float32),   # [recon|samples]
        ),
        in_specs=[_vmem(), _vmem(), _vmem()],
        out_specs=(_vmem(), _vmem()),
    )(xf, eps_flat, packed_params)

    # Split / broadcast in the wrapper (cheap XLA slices, no kernel work).
    mu = enc_out[:, :z_dim]
    logvar = enc_out[:, z_dim:]
    recon = dec_out[:, :x_dim].reshape(n, num_samples, x_dim)
    samples = dec_out[:, x_dim:].reshape(n, num_samples, z_dim)
    mu_exp = jnp.broadcast_to(mu[:, None, :], (n, num_samples, z_dim))
    logvar_exp = jnp.broadcast_to(logvar[:, None, :], (n, num_samples, z_dim))
    return recon, mu_exp, logvar_exp, samples


# --------------------------- deterministic params ------------------------------
def _linear(key, in_dim, out_dim):
    kw, kb = jax.random.split(key)
    bound = 1.0 / jnp.sqrt(in_dim)
    w = jax.random.uniform(kw, (in_dim, out_dim), jnp.float32, -bound, bound)
    b = jax.random.uniform(kb, (1, out_dim), jnp.float32, -bound, bound)
    return w, b


def make_params(key, x_dim, h_dim, z_dim):
    ks = jax.random.split(key, 7)
    enc_w1, enc_b1 = _linear(ks[0], x_dim, h_dim)
    enc_w2, enc_b2 = _linear(ks[1], h_dim, h_dim)
    wmu, bmu = _linear(ks[2], h_dim, z_dim)
    wstd, bstd = _linear(ks[3], h_dim, z_dim)
    dec_w1, dec_b1 = _linear(ks[4], z_dim, h_dim)
    dec_w2, dec_b2 = _linear(ks[5], h_dim, h_dim)
    dec_w3, dec_b3 = _linear(ks[6], h_dim, x_dim)
    return {
        "enc": {"w1": enc_w1, "b1": enc_b1, "w2": enc_w2, "b2": enc_b2,
                # fused mu/std head: [wmu | wstd], [bmu | bstd]
                "wh": jnp.concatenate([wmu, wstd], axis=1),
                "bh": jnp.concatenate([bmu, bstd], axis=1)},
        "dec": {"w1": dec_w1, "b1": dec_b1, "w2": dec_w2, "b2": dec_b2,
                "w3": dec_w3, "b3": dec_b3},
    }


def pack_params(params, *, n, num_samples):
    """Pack all kernel constants into one contiguous (rows, width) f32 slab.

    Each entry is 8-row aligned so in-kernel static slices start on a sublane
    tile boundary.  Returns (packed_array, layout) with
    layout[name] = (row_offset, rows, cols) as static Python ints.
    """
    enc, dec = params["enc"], params["dec"]
    ns = n * num_samples
    # one-hot replication matrix: sample row i <- batch row i // num_samples
    rep = (jnp.arange(ns)[:, None] // num_samples
           == jnp.arange(n)[None, :]).astype(jnp.float32)               # (n*S, n)

    entries = [
        ("ew1", enc["w1"]), ("eb1", enc["b1"]),
        ("ew2", enc["w2"]), ("eb2", enc["b2"]),
        ("ewh", enc["wh"]), ("ebh", enc["bh"]),
        ("dw1", dec["w1"]), ("db1", dec["b1"]),
        ("dw2", dec["w2"]), ("db2", dec["b2"]),
        ("dw3", dec["w3"]), ("db3", dec["b3"]),
        ("rep", rep),
    ]
    width = max(int(a.shape[1]) for _, a in entries)
    layout, blocks, row = {}, [], 0
    for name, a in entries:
        r, c = int(a.shape[0]), int(a.shape[1])
        layout[name] = (row, r, c)
        r_pad = -(-r // 8) * 8
        blk = jnp.zeros((r_pad, width), jnp.float32).at[:r, :c].set(a)
        blocks.append(blk)
        row += r_pad
    return jnp.concatenate(blocks, axis=0), layout


# ------------------------------ pure-JAX reference ------------------------------
# Faithful transcription of the original COV math (identity B, row norm, kron
# with eye(1), L @ eps) for correctness checking.
def cov_forward_ref(x, params, eps, *, x_dim, z_dim, num_samples):
    p, q = params["enc"], params["dec"]
    xf = x.reshape(-1, x_dim)
    n = xf.shape[0]
    b = num_samples * z_dim
    h1 = jnp.tanh(xf @ p["w1"] + p["b1"])
    h2 = jnp.tanh(h1 @ p["w2"] + p["b2"])
    head = h2 @ p["wh"] + p["bh"]
    mu = head[:, :z_dim]
    std = jnp.exp(head[:, z_dim:])
    eye_b = jnp.eye(b)
    bn = (1.0 / jnp.sqrt(jnp.sum(eye_b * eye_b, axis=1, keepdims=True))) * eye_b
    std_rep = jnp.tile(std, (1, num_samples))
    L = bn[None] * std_rep[:, :, None]                                   # (n, b, b)
    noise = jnp.einsum("nrc,nc->nr", L, eps.reshape(n, b))
    mu_exp = jnp.broadcast_to(mu[:, None, :], (n, num_samples, z_dim))
    samples = mu_exp + noise.reshape(n, num_samples, z_dim)
    std_exp = jnp.broadcast_to(std[:, None, :], (n, num_samples, z_dim))
    logvar = jnp.log(std_exp ** 2 + 1e-18)
    zf = samples.reshape(-1, z_dim)
    d1 = jnp.tanh(zf @ q["w1"] + q["b1"])
    d2 = jnp.tanh(d1 @ q["w2"] + q["b2"])
    recon = jax.nn.sigmoid(d2 @ q["w3"] + q["b3"]).reshape(n, num_samples, x_dim)
    return recon, mu_exp, logvar, samples


if __name__ == "__main__":
    X_DIM, H_DIM, Z_DIM, NUM_SAMPLES, BATCH = 16, 32, 4, 8, 2

    key = jax.random.PRNGKey(0)
    k_param, k_x, k_eps = jax.random.split(key, 3)

    params = make_params(k_param, X_DIM, H_DIM, Z_DIM)
    packed, layout = pack_params(params, n=BATCH, num_samples=NUM_SAMPLES)

    x = jax.random.uniform(k_x, (BATCH, X_DIM), jnp.float32)
    # eps plays the role of torch.normal(..., std=1.0) in COV.sample (training
    # mode), drawn deterministically here.
    eps = jax.random.normal(k_eps, (BATCH, NUM_SAMPLES * Z_DIM), jnp.float32)

    recon, mu, logvar, samples = cov_forward(
        x, packed, layout, eps,
        x_dim=X_DIM, z_dim=Z_DIM, num_samples=NUM_SAMPLES)
    jax.block_until_ready((recon, mu, logvar, samples))

    # correctness check against a pure-JAX reference of the original math
    r_ref, m_ref, lv_ref, s_ref = cov_forward_ref(
        x, params, eps, x_dim=X_DIM, z_dim=Z_DIM, num_samples=NUM_SAMPLES)
    for got, ref in ((recon, r_ref), (mu, m_ref), (logvar, lv_ref), (samples, s_ref)):
        assert got.shape == ref.shape
        assert jnp.allclose(got, ref, atol=1e-5, rtol=1e-5)

    print("KERNEL_OK")
</pallas_src>

<mosaic_0001>
module attributes {stable_mosaic.version = 11 : i64} {
  func.func @cov_fused_kernel(%arg0: memref<2x16xf32, #tpu.memory_space<vmem>>, %arg1: memref<16x4xf32, #tpu.memory_space<vmem>>, %arg2: memref<216x32xf32, #tpu.memory_space<vmem>>, %arg3: memref<2x8xf32, #tpu.memory_space<vmem>>, %arg4: memref<16x20xf32, #tpu.memory_space<vmem>>) attributes {dimension_semantics = [], scalar_prefetch = 0 : i64, scratch_operands = 0 : i64, tpu.core_type = #tpu.core_type<tc>} {
    %c0 = arith.constant 0 : index
    %c0_0 = arith.constant 0 : index
    %0 = vector.load %arg0[%c0, %c0_0] : memref<2x16xf32, #tpu.memory_space<vmem>>, vector<2x16xf32>
    %c0_1 = arith.constant 0 : index
    %c0_2 = arith.constant 0 : index
    %1 = vector.load %arg2[%c0_1, %c0_2] : memref<216x32xf32, #tpu.memory_space<vmem>>, vector<16x32xf32>
    %cst = arith.constant dense<0.000000e+00> : vector<2x32xf32>
    %2 = tpu.matmul %0, %1, %cst {dimension_numbers = #tpu.dot_dimension_numbers<[1], [0], [0], [1], [0, 0, 1, 1], [], []>} : vector<2x16xf32>, vector<16x32xf32>, vector<2x32xf32> -> vector<2x32xf32>
    %c16 = arith.constant 16 : index
    %c0_3 = arith.constant 0 : index
    %3 = vector.load %arg2[%c16, %c0_3] : memref<216x32xf32, #tpu.memory_space<vmem>>, vector<1x32xf32>
    %4 = vector.broadcast %3 : vector<1x32xf32> to vector<2x32xf32>
    %5 = arith.addf %2, %4 : vector<2x32xf32>
    %6 = math.tanh %5 : vector<2x32xf32>
    %c24 = arith.constant 24 : index
    %c0_4 = arith.constant 0 : index
    %7 = vector.load %arg2[%c24, %c0_4] : memref<216x32xf32, #tpu.memory_space<vmem>>, vector<32x32xf32>
    %cst_5 = arith.constant dense<0.000000e+00> : vector<2x32xf32>
    %8 = tpu.matmul %6, %7, %cst_5 {dimension_numbers = #tpu.dot_dimension_numbers<[1], [0], [0], [1], [0, 0, 1, 1], [], []>} : vector<2x32xf32>, vector<32x32xf32>, vector<2x32xf32> -> vector<2x32xf32>
    %c56 = arith.constant 56 : index
    %c0_6 = arith.constant 0 : index
    %9 = vector.load %arg2[%c56, %c0_6] : memref<216x32xf32, #tpu.memory_space<vmem>>, vector<1x32xf32>
    %10 = vector.broadcast %9 : vector<1x32xf32> to vector<2x32xf32>
    %11 = arith.addf %8, %10 : vector<2x32xf32>
    %12 = math.tanh %11 : vector<2x32xf32>
    %c64 = arith.constant 64 : index
    %c0_7 = arith.constant 0 : index
    %13 = vector.load %arg2[%c64, %c0_7] : memref<216x32xf32, #tpu.memory_space<vmem>>, vector<32x8xf32>
    %cst_8 = arith.constant dense<0.000000e+00> : vector<2x8xf32>
    %14 = tpu.matmul %12, %13, %cst_8 {dimension_numbers = #tpu.dot_dimension_numbers<[1], [0], [0], [1], [0, 0, 1, 1], [], []>} : vector<2x32xf32>, vector<32x8xf32>, vector<2x8xf32> -> vector<2x8xf32>
    %c96 = arith.constant 96 : index
    %c0_9 = arith.constant 0 : index
    %15 = vector.load %arg2[%c96, %c0_9] : memref<216x32xf32, #tpu.memory_space<vmem>>, vector<1x8xf32>
    %16 = vector.broadcast %15 : vector<1x8xf32> to vector<2x8xf32>
    %17 = arith.addf %14, %16 : vector<2x8xf32>
    %18 = vector.extract_strided_slice %17 {offsets = [0, 0], sizes = [2, 4], strides = [1, 1]} : vector<2x8xf32> to vector<2x4xf32>
    %19 = vector.extract_strided_slice %17 {offsets = [0, 4], sizes = [2, 4], strides = [1, 1]} : vector<2x8xf32> to vector<2x4xf32>
    %20 = math.exp %19 : vector<2x4xf32>
    %21 = arith.mulf %20, %20 : vector<2x4xf32>
    %cst_10 = arith.constant 1.000000e-18 : f32
    %22 = vector.broadcast %cst_10 : f32 to vector<2x4xf32>
    %23 = arith.addf %21, %22 : vector<2x4xf32>
    %24 = math.log %23 : vector<2x4xf32>
    %25 = tpu.concatenate %18, %24 in 1 : vector<2x4xf32>, vector<2x4xf32> -> vector<2x8xf32>
    %c0_11 = arith.constant 0 : index
    %c0_12 = arith.constant 0 : index
    %26 = vector.load %arg3[%c0_11, %c0_12] : memref<2x8xf32, #tpu.memory_space<vmem>>, vector<2x8xf32>
    tpu.vector_store %arg3[%c0_11, %c0_12], %25 {strides = array<i32>} : memref<2x8xf32, #tpu.memory_space<vmem>>, vector<2x8xf32>,
    %27 = tpu.concatenate %18, %20 in 1 : vector<2x4xf32>, vector<2x4xf32> -> vector<2x8xf32>
    %c200 = arith.constant 200 : index
    %c0_13 = arith.constant 0 : index
    %28 = vector.load %arg2[%c200, %c0_13] : memref<216x32xf32, #tpu.memory_space<vmem>>, vector<16x2xf32>
    %cst_14 = arith.constant dense<0.000000e+00> : vector<16x8xf32>
    %29 = tpu.matmul %28, %27, %cst_14 {dimension_numbers = #tpu.dot_dimension_numbers<[1], [0], [0], [1], [0, 0, 1, 1], [], []>} : vector<16x2xf32>, vector<2x8xf32>, vector<16x8xf32> -> vector<16x8xf32>
    %30 = vector.extract_strided_slice %29 {offsets = [0, 0], sizes = [16, 4], strides = [1, 1]} : vector<16x8xf32> to vector<16x4xf32>
    %31 = vector.extract_strided_slice %29 {offsets = [0, 4], sizes = [16, 4], strides = [1, 1]} : vector<16x8xf32> to vector<16x4xf32>
    %c0_15 = arith.constant 0 : index
    %c0_16 = arith.constant 0 : index
    %32 = vector.load %arg1[%c0_15, %c0_16] : memref<16x4xf32, #tpu.memory_space<vmem>>, vector<16x4xf32>
    %33 = arith.mulf %31, %32 : vector<16x4xf32>
    %34 = arith.addf %30, %33 : vector<16x4xf32>
    %c104 = arith.constant 104 : index
    %c0_17 = arith.constant 0 : index
    %35 = vector.load %arg2[%c104, %c0_17] : memref<216x32xf32, #tpu.memory_space<vmem>>, vector<4x32xf32>
    %cst_18 = arith.constant dense<0.000000e+00> : vector<16x32xf32>
    %36 = tpu.matmul %34, %35, %cst_18 {dimension_numbers = #tpu.dot_dimension_numbers<[1], [0], [0], [1], [0, 0, 1, 1], [], []>} : vector<16x4xf32>, vector<4x32xf32>, vector<16x32xf32> -> vector<16x32xf32>
    %c112 = arith.constant 112 : index
    %c0_19 = arith.constant 0 : index
    %37 = vector.load %arg2[%c112, %c0_19] : memref<216x32xf32, #tpu.memory_space<vmem>>, vector<1x32xf32>
    %38 = vector.broadcast %37 : vector<1x32xf32> to vector<16x32xf32>
    %39 = arith.addf %36, %38 : vector<16x32xf32>
    %40 = math.tanh %39 : vector<16x32xf32>
    %c120 = arith.constant 120 : index
    %c0_20 = arith.constant 0 : index
    %41 = vector.load %arg2[%c120, %c0_20] : memref<216x32xf32, #tpu.memory_space<vmem>>, vector<32x32xf32>
    %cst_21 = arith.constant dense<0.000000e+00> : vector<16x32xf32>
    %42 = tpu.matmul %40, %41, %cst_21 {dimension_numbers = #tpu.dot_dimension_numbers<[1], [0], [0], [1], [0, 0, 1, 1], [], []>} : vector<16x32xf32>, vector<32x32xf32>, vector<16x32xf32> -> vector<16x32xf32>
    %c152 = arith.constant 152 : index
    %c0_22 = arith.constant 0 : index
    %43 = vector.load %arg2[%c152, %c0_22] : memref<216x32xf32, #tpu.memory_space<vmem>>, vector<1x32xf32>
    %44 = vector.broadcast %43 : vector<1x32xf32> to vector<16x32xf32>
    %45 = arith.addf %42, %44 : vector<16x32xf32>
    %46 = math.tanh %45 : vector<16x32xf32>
    %c160 = arith.constant 160 : index
    %c0_23 = arith.constant 0 : index
    %47 = vector.load %arg2[%c160, %c0_23] : memref<216x32xf32, #tpu.memory_space<vmem>>, vector<32x16xf32>
    %cst_24 = arith.constant dense<0.000000e+00> : vector<16x16xf32>
    %48 = tpu.matmul %46, %47, %cst_24 {dimension_numbers = #tpu.dot_dimension_numbers<[1], [0], [0], [1], [0, 0, 1, 1], [], []>} : vector<16x32xf32>, vector<32x16xf32>, vector<16x16xf32> -> vector<16x16xf32>
    %c192 = arith.constant 192 : index
    %c0_25 = arith.constant 0 : index
    %49 = vector.load %arg2[%c192, %c0_25] : memref<216x32xf32, #tpu.memory_space<vmem>>, vector<1x16xf32>
    %50 = vector.broadcast %49 : vector<1x16xf32> to vector<16x16xf32>
    %51 = arith.addf %48, %50 : vector<16x16xf32>
    %52 = arith.negf %51 : vector<16x16xf32>
    %53 = math.exp %52 : vector<16x16xf32>
    %cst_26 = arith.constant 1.000000e+00 : f32
    %54 = vector.broadcast %cst_26 : f32 to vector<16x16xf32>
    %55 = arith.addf %54, %53 : vector<16x16xf32>
    %56 = arith.divf %54, %55 : vector<16x16xf32>
    %57 = tpu.concatenate %56, %34 in 1 : vector<16x16xf32>, vector<16x4xf32> -> vector<16x20xf32>
    %c0_27 = arith.constant 0 : index
    %c0_28 = arith.constant 0 : index
    %58 = vector.load %arg4[%c0_27, %c0_28] : memref<16x20xf32, #tpu.memory_space<vmem>>, vector<16x20xf32>
    tpu.vector_store %arg4[%c0_27, %c0_28], %57 {strides = array<i32>} : memref<16x20xf32, #tpu.memory_space<vmem>>, vector<16x20xf32>,
    return
  }
}

</mosaic_0001>

<llo_original>
// kernel: tpu_custom_call.1
$region0: #{tpu_custom_call.1}
  #allocation0 [shape = 'u32[]', space=smem, size = 0x4, offset = 0x4, fixed_abs, tag = 'smem constant byte address 0x4 - core index']
  #allocation1 [shape = 'u32[144,128]{1,0:T(1,128)}', space=vmem, size = 0x12000, scoped, tag = 'internal scratch']
  %s0 = inlined_call_operand.vmem [shape: f32[2,16], index: 0, kind: input, shape index: {}]
  %s1 = inlined_call_operand.vmem [shape: f32[16,4], index: 1, kind: input, shape index: {}]
  %s2 = inlined_call_operand.vmem [shape: f32[216,32], index: 2, kind: input, shape index: {}]
  %s3 = inlined_call_operand.hbm [shape: f32[2,8], index: 3, kind: output, shape index: {0}]
  %s4 = inlined_call_operand.hbm [shape: f32[16,20], index: 4, kind: output, shape index: {1}]
  %5 = xla_tuple %s3, %s4
  %s6 = sld [smem:[#allocation0]]
  $region30: #{tpu_custom_call.1} parent=0
    _
  %s8 = ssub.s32 1, %s6
  %s9 = scalar_select 0, %s8, %s6
  $region1: #{tpu_custom_call.1} parent=0
    #allocation2 [shape = 'u8[1024]{0}', space=vmem, size = 0x400, scoped, tag = 'output window, operand 0, single buffered']
    #allocation3 [shape = 's32[1]{0}', space=sflag, size = 0x4, scoped, tag = 'scoped memory for tpu_custom_call.1']
    #allocation4 [shape = 'u8[8192]{0}', space=vmem, size = 0x2000, scoped, tag = 'output window, operand 1, single buffered']
    #allocation5 [shape = 's32[1]{0}', space=sflag, size = 0x4, scoped, tag = 'scoped memory for tpu_custom_call.1']
    %10 = vsyncpa [#allocation3], 0
    %11 = vsyncpa [#allocation5], 0
    // Predicated region
    $region2: #{tpu_custom_call.1} parent=1 // pred_check
      _
    $region3: #{tpu_custom_call.1} parent=1 // pred_check_branch
      %13 = sbr.rel (0) target = $region5
    $region4: #{tpu_custom_call.1} parent=1 // pred_region
      _
    $region5: #{tpu_custom_call.1} parent=1 // pred_fallthru
      _
    // Predicated region
    $region6: #{tpu_custom_call.1} parent=1 // pred_check
      _
    $region7: #{tpu_custom_call.1} parent=1 // pred_check_branch
      %15 = sbr.rel (0) target = $region9
    $region8: #{tpu_custom_call.1} parent=1 // pred_region
      _
    $region9: #{tpu_custom_call.1} parent=1 // pred_fallthru
      _
    // Predicated region
    $region10: #{tpu_custom_call.1} parent=1 // pred_check
      _
    $region11: #{tpu_custom_call.1} parent=1 // pred_check_branch
      %17 = sbr.rel (0) target = $region13
    $region12: #{tpu_custom_call.1} parent=1 // pred_region
      _
    $region13: #{tpu_custom_call.1} parent=1 // pred_fallthru
      _
    %v18 = vld [vmem:[%s0] sm:$0x3]
    %v19 = vld [vmem:[%s2] sm:$0xff]
    %v20 = vld [vmem:[%s2 + $0x8] sm:$0xff]
    %v21 = vld [vmem:[%s2 + $0x10] sm:$0x1]
    %v22 = vlaneseq
    %v23 = vshrl.u32 %v22, 7
    %v24 = vsub.s32 0, %v23
    %v25 = vrot.slane %v21, %v24
    %vm26 = vcmask 130048
    %v28 = vsel %vm26, %v18, 0
    %30 = vmatprep.subr.mxu0 0.0
    %31 = vmatpush1.msra.mxu0 %v19
    %32 = vmatprep.subr.mxu0 0.0
    %33 = vmatpush1.msra.mxu0 %v20
    %34 = vmatprep.subr.mxu0 0.0
    %35 = vmatpush1.msra.mxu0 0.0
    %36 = vmatprep.subr.mxu0 0.0
    %37 = vmatpush1.msra.mxu0 0.0
    %38 = vmatprep.subr.mxu0 0.0
    %39 = vmatpush1.msra.mxu0 0.0
    %40 = vmatprep.subr.mxu0 0.0
    %41 = vmatpush1.msra.mxu0 0.0
    %42 = vmatprep.subr.mxu0 0.0
    %43 = vmatpush1.msra.mxu0 0.0
    %44 = vmatprep.subr.mxu0 0.0
    %45 = vmatpush1.msra.mxu0 0.0
    %46 = vmatprep.subr.mxu0 0.0
    %47 = vmatpush1.msra.mxu0 0.0
    %48 = vmatprep.subr.mxu0 0.0
    %49 = vmatpush1.msra.mxu0 0.0
    %50 = vmatprep.subr.mxu0 0.0
    %51 = vmatpush1.msra.mxu0 0.0
    %52 = vmatprep.subr.mxu0 0.0
    %53 = vmatpush1.msra.mxu0 0.0
    %54 = vmatprep.subr.mxu0 0.0
    %55 = vmatpush1.msra.mxu0 0.0
    %56 = vmatprep.subr.mxu0 0.0
    %57 = vmatpush1.msra.mxu0 0.0
    %58 = vmatprep.subr.mxu0 0.0
    %59 = vmatpush1.msra.mxu0 0.0
    %60 = vmatprep.subr.mxu0 0.0
    %61 = vmatpush1.msra.mxu0 0.0
    %62 = vmatprep.subr.mxu0 0.0
    %63 = vmatpush1.msra.mxu0 0.0
    %64 = vmatprep.subr.mxu0 0.0
    %65 = vmatpush1.msra.mxu0 0.0
    %66 = vmatprep.subr.mxu0 0.0
    %67 = vmatpush1.msra.mxu0 0.0
    %68 = vmatprep.subr.mxu0 0.0
    %69 = vmatpush1.msra.mxu0 0.0
    %70 = vmatprep.subr.mxu0 0.0
    %71 = vmatpush1.msra.mxu0 0.0
    %72 = vmatprep.subr.mxu0 0.0
    %73 = vmatpush1.msra.mxu0 0.0
    %74 = vmatprep.subr.mxu0 0.0
    %75 = vmatpush1.msra.mxu0 0.0
    %76 = vmatprep.subr.mxu0 0.0
    %77 = vmatpush1.msra.mxu0 0.0
    %78 = vmatprep.subr.mxu0 0.0
    %79 = vmatpush1.msra.mxu0 0.0
    %80 = vmatprep.subr.mxu0 0.0
    %81 = vmatpush1.msra.mxu0 0.0
    %82 = vmatprep.subr.mxu0 0.0
    %83 = vmatpush1.msra.mxu0 0.0
    %84 = vmatprep.subr.mxu0 0.0
    %85 = vmatpush1.msra.mxu0 0.0
    %86 = vmatprep.subr.mxu0 0.0
    %87 = vmatpush1.msra.mxu0 0.0
    %88 = vmatprep.subr.mxu0 0.0
    %89 = vmatpush1.msra.mxu0 0.0
    %90 = vmatprep.subr.mxu0 0.0
    %91 = vmatpush1.msra.mxu0 0.0
    %92 = vmatprep.subr.mxu0 0.0
    %93 = vmatpush1.msra.mxu0 0.0
    %94 = vmatprep.mubr.f32.mxu0 0.0
    %95 = vmatmul.mubr.f32.gmra.mrb[0].mxu0 %v28
    %v96 = vpop.f32.mrb[0].mxu0
    %v97 = vadd.f32 %v25, %v96
    %v98 = vpop.f32.mrb[0].mxu0
    %99 = vdwg.mxu0
    %v100 = vtanh.pop %v97
    %v101 = vld [vmem:[%s2 + $0x18] sm:$0xff]
    %v102 = vld [vmem:[%s2 + $0x20] sm:$0xff]
    %v103 = vld [vmem:[%s2 + $0x28] sm:$0xff]
    %v104 = vld [vmem:[%s2 + $0x30] sm:$0xff]
    %v105 = vld [vmem:[%s2 + $0x38] sm:$0x1]
    %v106 = vlaneseq
    %v107 = vshrl.u32 %v106, 7
    %v108 = vsub.s32 0, %v107
    %v109 = vrot.slane %v105, %v108
    %vm110 = vcmask 261120
    %v112 = vsel %vm110, %v100, 0
    %114 = vmatprep.subr.mxu0 0.0
    %115 = vmatpush1.msra.mxu0 %v101
    %116 = vmatprep.subr.mxu0 0.0
    %117 = vmatpush1.msra.mxu0 %v102
    %118 = vmatprep.subr.mxu0 0.0
    %119 = vmatpush1.msra.mxu0 %v103
    %120 = vmatprep.subr.mxu0 0.0
    %121 = vmatpush1.msra.mxu0 %v104
    %122 = vmatprep.subr.mxu0 0.0
    %123 = vmatpush1.msra.mxu0 0.0
    %124 = vmatprep.subr.mxu0 0.0
    %125 = vmatpush1.msra.mxu0 0.0
    %126 = vmatprep.subr.mxu0 0.0
    %127 = vmatpush1.msra.mxu0 0.0
    %128 = vmatprep.subr.mxu0 0.0
    %129 = vmatpush1.msra.mxu0 0.0
    %130 = vmatprep.subr.mxu0 0.0
    %131 = vmatpush1.msra.mxu0 0.0
    %132 = vmatprep.subr.mxu0 0.0
    %133 = vmatpush1.msra.mxu0 0.0
    %134 = vmatprep.subr.mxu0 0.0
    %135 = vmatpush1.msra.mxu0 0.0
    %136 = vmatprep.subr.mxu0 0.0
    %137 = vmatpush1.msra.mxu0 0.0
    %138 = vmatprep.subr.mxu0 0.0
    %139 = vmatpush1.msra.mxu0 0.0
    %140 = vmatprep.subr.mxu0 0.0
    %141 = vmatpush1.msra.mxu0 0.0
    %142 = vmatprep.subr.mxu0 0.0
    %143 = vmatpush1.msra.mxu0 0.0
    %144 = vmatprep.subr.mxu0 0.0
    %145 = vmatpush1.msra.mxu0 0.0
    %146 = vmatprep.subr.mxu0 0.0
    %147 = vmatpush1.msra.mxu0 0.0
    %148 = vmatprep.subr.mxu0 0.0
    %149 = vmatpush1.msra.mxu0 0.0
    %150 = vmatprep.subr.mxu0 0.0
    %151 = vmatpush1.msra.mxu0 0.0
    %152 = vmatprep.subr.mxu0 0.0
    %153 = vmatpush1.msra.mxu0 0.0
    %154 = vmatprep.subr.mxu0 0.0
    %155 = vmatpush1.msra.mxu0 0.0
    %156 = vmatprep.subr.mxu0 0.0
    %157 = vmatpush1.msra.mxu0 0.0
    %158 = vmatprep.subr.mxu0 0.0
    %159 = vmatpush1.msra.mxu0 0.0
    %160 = vmatprep.subr.mxu0 0.0
    %161 = vmatpush1.msra.mxu0 0.0
    %162 = vmatprep.subr.mxu0 0.0
    %163 = vmatpush1.msra.mxu0 0.0
    %164 = vmatprep.subr.mxu0 0.0
    %165 = vmatpush1.msra.mxu0 0.0
    %166 = vmatprep.subr.mxu0 0.0
    %167 = vmatpush1.msra.mxu0 0.0
    %168 = vmatprep.subr.mxu0 0.0
    %169 = vmatpush1.msra.mxu0 0.0
    %170 = vmatprep.subr.mxu0 0.0
    %171 = vmatpush1.msra.mxu0 0.0
    %172 = vmatprep.subr.mxu0 0.0
    %173 = vmatpush1.msra.mxu0 0.0
    %174 = vmatprep.subr.mxu0 0.0
    %175 = vmatpush1.msra.mxu0 0.0
    %176 = vmatprep.subr.mxu0 0.0
    %177 = vmatpush1.msra.mxu0 0.0
    %178 = vmatprep.mubr.f32.mxu0 0.0
    %179 = vmatmul.mubr.f32.gmra.mrb[0].mxu0 %v112
    %v180 = vpop.f32.mrb[0].mxu0
    %v181 = vadd.f32 %v109, %v180
    %v182 = vpop.f32.mrb[0].mxu0
    %183 = vdwg.mxu0
    %v184 = vtanh.pop %v181
    %v185 = vld [vmem:[%s2 + $0x40] sm:$0xff]
    %v186 = vld [vmem:[%s2 + $0x48] sm:$0xff]
    %v187 = vld [vmem:[%s2 + $0x50] sm:$0xff]
    %v188 = vld [vmem:[%s2 + $0x58] sm:$0xff]
    %v189 = vld [vmem:[%s2 + $0x60] sm:$0x1]
    %v190 = vlaneseq
    %v191 = vshrl.u32 %v190, 7
    %v192 = vsub.s32 0, %v191
    %v193 = vrot.slane %v189, %v192
    %v195 = vsel %vm110, %v184, 0
    %197 = vmatprep.subr.mxu0 0.0
    %198 = vmatpush1.msra.mxu0 %v185
    %199 = vmatprep.subr.mxu0 0.0
    %200 = vmatpush1.msra.mxu0 %v186
    %201 = vmatprep.subr.mxu0 0.0
    %202 = vmatpush1.msra.mxu0 %v187
    %203 = vmatprep.subr.mxu0 0.0
    %204 = vmatpush1.msra.mxu0 %v188
    %205 = vmatprep.subr.mxu0 0.0
    %206 = vmatpush1.msra.mxu0 0.0
    %207 = vmatprep.subr.mxu0 0.0
    %208 = vmatpush1.msra.mxu0 0.0
    %209 = vmatprep.subr.mxu0 0.0
    %210 = vmatpush1.msra.mxu0 0.0
    %211 = vmatprep.subr.mxu0 0.0
    %212 = vmatpush1.msra.mxu0 0.0
    %213 = vmatprep.subr.mxu0 0.0
    %214 = vmatpush1.msra.mxu0 0.0
    %215 = vmatprep.subr.mxu0 0.0
    %216 = vmatpush1.msra.mxu0 0.0
    %217 = vmatprep.subr.mxu0 0.0
    %218 = vmatpush1.msra.mxu0 0.0
    %219 = vmatprep.subr.mxu0 0.0
    %220 = vmatpush1.msra.mxu0 0.0
    %221 = vmatprep.subr.mxu0 0.0
    %222 = vmatpush1.msra.mxu0 0.0
    %223 = vmatprep.subr.mxu0 0.0
    %224 = vmatpush1.msra.mxu0 0.0
    %225 = vmatprep.subr.mxu0 0.0
    %226 = vmatpush1.msra.mxu0 0.0
    %227 = vmatprep.subr.mxu0 0.0
    %228 = vmatpush1.msra.mxu0 0.0
    %229 = vmatprep.subr.mxu0 0.0
    %230 = vmatpush1.msra.mxu0 0.0
    %231 = vmatprep.subr.mxu0 0.0
    %232 = vmatpush1.msra.mxu0 0.0
    %233 = vmatprep.subr.mxu0 0.0
    %234 = vmatpush1.msra.mxu0 0.0
    %235 = vmatprep.subr.mxu0 0.0
    %236 = vmatpush1.msra.mxu0 0.0
    %237 = vmatprep.subr.mxu0 0.0
    %238 = vmatpush1.msra.mxu0 0.0
    %239 = vmatprep.subr.mxu0 0.0
    %240 = vmatpush1.msra.mxu0 0.0
    %241 = vmatprep.subr.mxu0 0.0
    %242 = vmatpush1.msra.mxu0 0.0
    %243 = vmatprep.subr.mxu0 0.0
    %244 = vmatpush1.msra.mxu0 0.0
    %245 = vmatprep.subr.mxu0 0.0
    %246 = vmatpush1.msra.mxu0 0.0
    %247 = vmatprep.subr.mxu0 0.0
    %248 = vmatpush1.msra.mxu0 0.0
    %249 = vmatprep.subr.mxu0 0.0
    %250 = vmatpush1.msra.mxu0 0.0
    %251 = vmatprep.subr.mxu0 0.0
    %252 = vmatpush1.msra.mxu0 0.0
    %253 = vmatprep.subr.mxu0 0.0
    %254 = vmatpush1.msra.mxu0 0.0
    %255 = vmatprep.subr.mxu0 0.0
    %256 = vmatpush1.msra.mxu0 0.0
    %257 = vmatprep.subr.mxu0 0.0
    %258 = vmatpush1.msra.mxu0 0.0
    %259 = vmatprep.subr.mxu0 0.0
    %260 = vmatpush1.msra.mxu0 0.0
    %261 = vmatprep.mubr.f32.mxu0 0.0
    %262 = vmatmul.mubr.f32.gmra.mrb[0].mxu0 %v195
    %v263 = vpop.f32.mrb[0].mxu0
    %v264 = vadd.f32 %v193, %v263
    %v265 = vpop.f32.mrb[0].mxu0
    %266 = vdwg.mxu0
    %v267 = vmul.f32 %v264, 1.442695
    %v268 = vpow.pop %v267
    %v269 = vmul.f32 %v268, %v268
    %v270 = vadd.f32 %v269, 1e-18
    %v271 = vlog2.pop %v270
    %v272 = vmul.f32 %v271, 0.6931472
    %vm273 = vcmask 31744
    %v274 = vsel %vm273, %v264, %v272
    %vm275 = vcmask 58368
    %276 = vst.msk [vmem:[#allocation2] sm:$0x3] %vm275, %v274
    %v277 = vsel %vm273, %v264, %v268
    %v278 = vld [vmem:[%s2 + $0xc8] sm:$0xff]
    %v279 = vld [vmem:[%s2 + $0xd0] sm:$0xff]
    %vm280 = vcmask 15360
    %v282 = vsel %vm280, %v278, 0
    %v285 = vsel %vm280, %v279, 0
    %vm287 = vcmask 1041408
    %v289 = vsel %vm287, %v277, 0
    %291 = vmatprep.subr.mxu0 0.0
    %292 = vmatpush1.msra.mxu0 %v289
    %293 = vmatprep.subr.mxu0 0.0
    %294 = vmatpush1.msra.mxu0 0.0
    %295 = vmatprep.subr.mxu0 0.0
    %296 = vmatpush1.msra.mxu0 0.0
    %297 = vmatprep.subr.mxu0 0.0
    %298 = vmatpush1.msra.mxu0 0.0
    %299 = vmatprep.subr.mxu0 0.0
    %300 = vmatpush1.msra.mxu0 0.0
    %301 = vmatprep.subr.mxu0 0.0
    %302 = vmatpush1.msra.mxu0 0.0
    %303 = vmatprep.subr.mxu0 0.0
    %304 = vmatpush1.msra.mxu0 0.0
    %305 = vmatprep.subr.mxu0 0.0
    %306 = vmatpush1.msra.mxu0 0.0
    %307 = vmatprep.subr.mxu0 0.0
    %308 = vmatpush1.msra.mxu0 0.0
    %309 = vmatprep.subr.mxu0 0.0
    %310 = vmatpush1.msra.mxu0 0.0
    %311 = vmatprep.subr.mxu0 0.0
    %312 = vmatpush1.msra.mxu0 0.0
    %313 = vmatprep.subr.mxu0 0.0
    %314 = vmatpush1.msra.mxu0 0.0
    %315 = vmatprep.subr.mxu0 0.0
    %316 = vmatpush1.msra.mxu0 0.0
    %317 = vmatprep.subr.mxu0 0.0
    %318 = vmatpush1.msra.mxu0 0.0
    %319 = vmatprep.subr.mxu0 0.0
    %320 = vmatpush1.msra.mxu0 0.0
    %321 = vmatprep.subr.mxu0 0.0
    %322 = vmatpush1.msra.mxu0 0.0
    %323 = vmatprep.subr.mxu0 0.0
    %324 = vmatpush1.msra.mxu0 0.0
    %325 = vmatprep.subr.mxu0 0.0
    %326 = vmatpush1.msra.mxu0 0.0
    %327 = vmatprep.subr.mxu0 0.0
    %328 = vmatpush1.msra.mxu0 0.0
    %329 = vmatprep.subr.mxu0 0.0
    %330 = vmatpush1.msra.mxu0 0.0
    %331 = vmatprep.subr.mxu0 0.0
    %332 = vmatpush1.msra.mxu0 0.0
    %333 = vmatprep.subr.mxu0 0.0
    %334 = vmatpush1.msra.mxu0 0.0
    %335 = vmatprep.subr.mxu0 0.0
    %336 = vmatpush1.msra.mxu0 0.0
    %337 = vmatprep.subr.mxu0 0.0
    %338 = vmatpush1.msra.mxu0 0.0
    %339 = vmatprep.subr.mxu0 0.0
    %340 = vmatpush1.msra.mxu0 0.0
    %341 = vmatprep.subr.mxu0 0.0
    %342 = vmatpush1.msra.mxu0 0.0
    %343 = vmatprep.subr.mxu0 0.0
    %344 = vmatpush1.msra.mxu0 0.0
    %345 = vmatprep.subr.mxu0 0.0
    %346 = vmatpush1.msra.mxu0 0.0
    %347 = vmatprep.subr.mxu0 0.0
    %348 = vmatpush1.msra.mxu0 0.0
    %349 = vmatprep.subr.mxu0 0.0
    %350 = vmatpush1.msra.mxu0 0.0
    %351 = vmatprep.subr.mxu0 0.0
    %352 = vmatpush1.msra.mxu0 0.0
    %353 = vmatprep.subr.mxu0 0.0
    %354 = vmatpush1.msra.mxu0 0.0
    %355 = vmatprep.mubr.f32.mxu0 0.0
    %356 = vmatmul.mubr.f32.gmra.mrb[0].mxu0 %v282
    %v357 = vpop.f32.mrb[0].mxu0
    %v358 = vadd.f32 0.0, %v357
    %v359 = vpop.f32.mrb[0].mxu0
    %360 = vmatprep.mubr.f32.mxu0 0.0
    %361 = vmatmul.mubr.f32.gmra.mrb[0].mxu0 %v285
    %v362 = vpop.f32.mrb[0].mxu0
    %v363 = vadd.f32 0.0, %v362
    %v364 = vpop.f32.mrb[0].mxu0
    %365 = vdwg.mxu0
    %v366 = vld [vmem:[%s1] sm:$0xff]
    %v367 = vld [vmem:[%s1 + $0x8] sm:$0xff]
    %370 = vrot.lane.b32.xlu0 %v366, 4
    %v371 = vpop.permute.xlu0 %370
    %372 = vrot.lane.b32.xlu0 %v367, 4
    %v373 = vpop.permute.xlu0 %372
    %v376 = vmul.f32 %v358, %v371
    %v377 = vmul.f32 %v363, %v373
    %380 = vrot.lane.b32.xlu0 %v376, 124
    %v381 = vpop.permute.xlu0 %380
    %382 = vrot.lane.b32.xlu0 %v377, 124
    %v383 = vpop.permute.xlu0 %382
    %v386 = vadd.f32 %v358, %v381
    %v387 = vadd.f32 %v363, %v383
    %v388 = vld [vmem:[%s2 + $0x68] sm:$0xf]
    %v389 = vld [vmem:[%s2 + $0x70] sm:$0x1]
    %v390 = vlaneseq
    %v391 = vshrl.u32 %v390, 7
    %v392 = vsub.s32 0, %v391
    %v393 = vrot.slane %v389, %v392
    %v395 = vsel %vm273, %v386, 0
    %v398 = vsel %vm273, %v387, 0
    %vm400 = vcmask 1043456
    %v402 = vsel %vm400, %v388, 0
    %404 = vmatprep.subr.mxu0 0.0
    %405 = vmatpush1.msra.mxu0 %v402
    %406 = vmatprep.subr.mxu0 0.0
    %407 = vmatpush1.msra.mxu0 0.0
    %408 = vmatprep.subr.mxu0 0.0
    %409 = vmatpush1.msra.mxu0 0.0
    %410 = vmatprep.subr.mxu0 0.0
    %411 = vmatpush1.msra.mxu0 0.0
    %412 = vmatprep.subr.mxu0 0.0
    %413 = vmatpush1.msra.mxu0 0.0
    %414 = vmatprep.subr.mxu0 0.0
    %415 = vmatpush1.msra.mxu0 0.0
    %416 = vmatprep.subr.mxu0 0.0
    %417 = vmatpush1.msra.mxu0 0.0
    %418 = vmatprep.subr.mxu0 0.0
    %419 = vmatpush1.msra.mxu0 0.0
    %420 = vmatprep.subr.mxu0 0.0
    %421 = vmatpush1.msra.mxu0 0.0
    %422 = vmatprep.subr.mxu0 0.0
    %423 = vmatpush1.msra.mxu0 0.0
    %424 = vmatprep.subr.mxu0 0.0
    %425 = vmatpush1.msra.mxu0 0.0
    %426 = vmatprep.subr.mxu0 0.0
    %427 = vmatpush1.msra.mxu0 0.0
    %428 = vmatprep.subr.mxu0 0.0
    %429 = vmatpush1.msra.mxu0 0.0
    %430 = vmatprep.subr.mxu0 0.0
    %431 = vmatpush1.msra.mxu0 0.0
    %432 = vmatprep.subr.mxu0 0.0
    %433 = vmatpush1.msra.mxu0 0.0
    %434 = vmatprep.subr.mxu0 0.0
    %435 = vmatpush1.msra.mxu0 0.0
    %436 = vmatprep.subr.mxu0 0.0
    %437 = vmatpush1.msra.mxu0 0.0
    %438 = vmatprep.subr.mxu0 0.0
    %439 = vmatpush1.msra.mxu0 0.0
    %440 = vmatprep.subr.mxu0 0.0
    %441 = vmatpush1.msra.mxu0 0.0
    %442 = vmatprep.subr.mxu0 0.0
    %443 = vmatpush1.msra.mxu0 0.0
    %444 = vmatprep.subr.mxu0 0.0
    %445 = vmatpush1.msra.mxu0 0.0
    %446 = vmatprep.subr.mxu0 0.0
    %447 = vmatpush1.msra.mxu0 0.0
    %448 = vmatprep.subr.mxu0 0.0
    %449 = vmatpush1.msra.mxu0 0.0
    %450 = vmatprep.subr.mxu0 0.0
    %451 = vmatpush1.msra.mxu0 0.0
    %452 = vmatprep.subr.mxu0 0.0
    %453 = vmatpush1.msra.mxu0 0.0
    %454 = vmatprep.subr.mxu0 0.0
    %455 = vmatpush1.msra.mxu0 0.0
    %456 = vmatprep.subr.mxu0 0.0
    %457 = vmatpush1.msra.mxu0 0.0
    %458 = vmatprep.subr.mxu0 0.0
    %459 = vmatpush1.msra.mxu0 0.0
    %460 = vmatprep.subr.mxu0 0.0
    %461 = vmatpush1.msra.mxu0 0.0
    %462 = vmatprep.subr.mxu0 0.0
    %463 = vmatpush1.msra.mxu0 0.0
    %464 = vmatprep.subr.mxu0 0.0
    %465 = vmatpush1.msra.mxu0 0.0
    %466 = vmatprep.subr.mxu0 0.0
    %467 = vmatpush1.msra.mxu0 0.0
    %468 = vmatprep.mubr.f32.mxu0 0.0
    %469 = vmatmul.mubr.f32.gmra.mrb[0].mxu0 %v395
    %v470 = vpop.f32.mrb[0].mxu0
    %v471 = vadd.f32 %v393, %v470
    %v472 = vpop.f32.mrb[0].mxu0
    %473 = vmatprep.mubr.f32.mxu0 0.0
    %474 = vmatmul.mubr.f32.gmra.mrb[0].mxu0 %v398
    %v475 = vpop.f32.mrb[0].mxu0
    %v476 = vadd.f32 %v393, %v475
    %v477 = vpop.f32.mrb[0].mxu0
    %478 = vdwg.mxu0
    %v479 = vtanh.pop %v471
    %v480 = vtanh.pop %v476
    %v481 = vld [vmem:[%s2 + $0x78] sm:$0xff]
    %v482 = vld [vmem:[%s2 + $0x80] sm:$0xff]
    %v483 = vld [vmem:[%s2 + $0x88] sm:$0xff]
    %v484 = vld [vmem:[%s2 + $0x90] sm:$0xff]
    %v485 = vld [vmem:[%s2 + $0x98] sm:$0x1]
    %v486 = vlaneseq
    %v487 = vshrl.u32 %v486, 7
    %v488 = vsub.s32 0, %v487
    %v489 = vrot.slane %v485, %v488
    %v491 = vsel %vm110, %v479, 0
    %v494 = vsel %vm110, %v480, 0
    %496 = vmatprep.subr.mxu0 0.0
    %497 = vmatpush1.msra.mxu0 %v481
    %498 = vmatprep.subr.mxu0 0.0
    %499 = vmatpush1.msra.mxu0 %v482
    %500 = vmatprep.subr.mxu0 0.0
    %501 = vmatpush1.msra.mxu0 %v483
    %502 = vmatprep.subr.mxu0 0.0
    %503 = vmatpush1.msra.mxu0 %v484
    %504 = vmatprep.subr.mxu0 0.0
    %505 = vmatpush1.msra.mxu0 0.0
    %506 = vmatprep.subr.mxu0 0.0
    %507 = vmatpush1.msra.mxu0 0.0
    %508 = vmatprep.subr.mxu0 0.0
    %509 = vmatpush1.msra.mxu0 0.0
    %510 = vmatprep.subr.mxu0 0.0
    %511 = vmatpush1.msra.mxu0 0.0
    %512 = vmatprep.subr.mxu0 0.0
    %513 = vmatpush1.msra.mxu0 0.0
    %514 = vmatprep.subr.mxu0 0.0
    %515 = vmatpush1.msra.mxu0 0.0
    %516 = vmatprep.subr.mxu0 0.0
    %517 = vmatpush1.msra.mxu0 0.0
    %518 = vmatprep.subr.mxu0 0.0
    %519 = vmatpush1.msra.mxu0 0.0
    %520 = vmatprep.subr.mxu0 0.0
    %521 = vmatpush1.msra.mxu0 0.0
    %522 = vmatprep.subr.mxu0 0.0
    %523 = vmatpush1.msra.mxu0 0.0
    %524 = vmatprep.subr.mxu0 0.0
    %525 = vmatpush1.msra.mxu0 0.0
    %526 = vmatprep.subr.mxu0 0.0
    %527 = vmatpush1.msra.mxu0 0.0
    %528 = vmatprep.subr.mxu0 0.0
    %529 = vmatpush1.msra.mxu0 0.0
    %530 = vmatprep.subr.mxu0 0.0
    %531 = vmatpush1.msra.mxu0 0.0
    %532 = vmatprep.subr.mxu0 0.0
    %533 = vmatpush1.msra.mxu0 0.0
    %534 = vmatprep.subr.mxu0 0.0
    %535 = vmatpush1.msra.mxu0 0.0
    %536 = vmatprep.subr.mxu0 0.0
    %537 = vmatpush1.msra.mxu0 0.0
    %538 = vmatprep.subr.mxu0 0.0
    %539 = vmatpush1.msra.mxu0 0.0
    %540 = vmatprep.subr.mxu0 0.0
    %541 = vmatpush1.msra.mxu0 0.0
    %542 = vmatprep.subr.mxu0 0.0
    %543 = vmatpush1.msra.mxu0 0.0
    %544 = vmatprep.subr.mxu0 0.0
    %545 = vmatpush1.msra.mxu0 0.0
    %546 = vmatprep.subr.mxu0 0.0
    %547 = vmatpush1.msra.mxu0 0.0
    %548 = vmatprep.subr.mxu0 0.0
    %549 = vmatpush1.msra.mxu0 0.0
    %550 = vmatprep.subr.mxu0 0.0
    %551 = vmatpush1.msra.mxu0 0.0
    %552 = vmatprep.subr.mxu0 0.0
    %553 = vmatpush1.msra.mxu0 0.0
    %554 = vmatprep.subr.mxu0 0.0
    %555 = vmatpush1.msra.mxu0 0.0
    %556 = vmatprep.subr.mxu0 0.0
    %557 = vmatpush1.msra.mxu0 0.0
    %558 = vmatprep.subr.mxu0 0.0
    %559 = vmatpush1.msra.mxu0 0.0
    %560 = vmatprep.mubr.f32.mxu0 0.0
    %561 = vmatmul.mubr.f32.gmra.mrb[0].mxu0 %v491
    %v562 = vpop.f32.mrb[0].mxu0
    %v563 = vadd.f32 %v489, %v562
    %v564 = vpop.f32.mrb[0].mxu0
    %565 = vmatprep.mubr.f32.mxu0 0.0
    %566 = vmatmul.mubr.f32.gmra.mrb[0].mxu0 %v494
    %v567 = vpop.f32.mrb[0].mxu0
    %v568 = vadd.f32 %v489, %v567
    %v569 = vpop.f32.mrb[0].mxu0
    %570 = vdwg.mxu0
    %v571 = vtanh.pop %v563
    %v572 = vtanh.pop %v568
    %v573 = vld [vmem:[%s2 + $0xa0] sm:$0xff]
    %v574 = vld [vmem:[%s2 + $0xa8] sm:$0xff]
    %v575 = vld [vmem:[%s2 + $0xb0] sm:$0xff]
    %v576 = vld [vmem:[%s2 + $0xb8] sm:$0xff]
    %v577 = vld [vmem:[%s2 + $0xc0] sm:$0x1]
    %v578 = vlaneseq
    %v579 = vshrl.u32 %v578, 7
    %v580 = vsub.s32 0, %v579
    %v581 = vrot.slane %v577, %v580
    %v583 = vsel %vm110, %v571, 0
    %v586 = vsel %vm110, %v572, 0
    %588 = vmatprep.subr.mxu0 0.0
    %589 = vmatpush1.msra.mxu0 %v573
    %590 = vmatprep.subr.mxu0 0.0
    %591 = vmatpush1.msra.mxu0 %v574
    %592 = vmatprep.subr.mxu0 0.0
    %593 = vmatpush1.msra.mxu0 %v575
    %594 = vmatprep.subr.mxu0 0.0
    %595 = vmatpush1.msra.mxu0 %v576
    %596 = vmatprep.subr.mxu0 0.0
    %597 = vmatpush1.msra.mxu0 0.0
    %598 = vmatprep.subr.mxu0 0.0
    %599 = vmatpush1.msra.mxu0 0.0
    %600 = vmatprep.subr.mxu0 0.0
    %601 = vmatpush1.msra.mxu0 0.0
    %602 = vmatprep.subr.mxu0 0.0
    %603 = vmatpush1.msra.mxu0 0.0
    %604 = vmatprep.subr.mxu0 0.0
    %605 = vmatpush1.msra.mxu0 0.0
    %606 = vmatprep.subr.mxu0 0.0
    %607 = vmatpush1.msra.mxu0 0.0
    %608 = vmatprep.subr.mxu0 0.0
    %609 = vmatpush1.msra.mxu0 0.0
    %610 = vmatprep.subr.mxu0 0.0
    %611 = vmatpush1.msra.mxu0 0.0
    %612 = vmatprep.subr.mxu0 0.0
    %613 = vmatpush1.msra.mxu0 0.0
    %614 = vmatprep.subr.mxu0 0.0
    %615 = vmatpush1.msra.mxu0 0.0
    %616 = vmatprep.subr.mxu0 0.0
    %617 = vmatpush1.msra.mxu0 0.0
    %618 = vmatprep.subr.mxu0 0.0
    %619 = vmatpush1.msra.mxu0 0.0
    %620 = vmatprep.subr.mxu0 0.0
    %621 = vmatpush1.msra.mxu0 0.0
    %622 = vmatprep.subr.mxu0 0.0
    %623 = vmatpush1.msra.mxu0 0.0
    %624 = vmatprep.subr.mxu0 0.0
    %625 = vmatpush1.msra.mxu0 0.0
    %626 = vmatprep.subr.mxu0 0.0
    %627 = vmatpush1.msra.mxu0 0.0
    %628 = vmatprep.subr.mxu0 0.0
    %629 = vmatpush1.msra.mxu0 0.0
    %630 = vmatprep.subr.mxu0 0.0
    %631 = vmatpush1.msra.mxu0 0.0
    %632 = vmatprep.subr.mxu0 0.0
    %633 = vmatpush1.msra.mxu0 0.0
    %634 = vmatprep.subr.mxu0 0.0
    %635 = vmatpush1.msra.mxu0 0.0
    %636 = vmatprep.subr.mxu0 0.0
    %637 = vmatpush1.msra.mxu0 0.0
    %638 = vmatprep.subr.mxu0 0.0
    %639 = vmatpush1.msra.mxu0 0.0
    %640 = vmatprep.subr.mxu0 0.0
    %641 = vmatpush1.msra.mxu0 0.0
    %642 = vmatprep.subr.mxu0 0.0
    %643 = vmatpush1.msra.mxu0 0.0
    %644 = vmatprep.subr.mxu0 0.0
    %645 = vmatpush1.msra.mxu0 0.0
    %646 = vmatprep.subr.mxu0 0.0
    %647 = vmatpush1.msra.mxu0 0.0
    %648 = vmatprep.subr.mxu0 0.0
    %649 = vmatpush1.msra.mxu0 0.0
    %650 = vmatprep.subr.mxu0 0.0
    %651 = vmatpush1.msra.mxu0 0.0
    %652 = vmatprep.mubr.f32.mxu0 0.0
    %653 = vmatmul.mubr.f32.gmra.mrb[0].mxu0 %v583
    %v654 = vpop.f32.mrb[0].mxu0
    %v655 = vadd.f32 %v581, %v654
    %v656 = vpop.f32.mrb[0].mxu0
    %657 = vmatprep.mubr.f32.mxu0 0.0
    %658 = vmatmul.mubr.f32.gmra.mrb[0].mxu0 %v586
    %v659 = vpop.f32.mrb[0].mxu0
    %v660 = vadd.f32 %v581, %v659
    %v661 = vpop.f32.mrb[0].mxu0
    %662 = vdwg.mxu0
    %v663 = vxor.u32 %v655, 2147483648
    %v664 = vxor.u32 %v660, 2147483648
    %v665 = vmul.f32 %v663, 1.442695
    %v666 = vpow.pop %v665
    %v667 = vmul.f32 %v664, 1.442695
    %v668 = vpow.pop %v667
    %v669 = vadd.f32 %v666, 1.0
    %v670 = vadd.f32 %v668, 1.0
    %v671 = vrcp.pop %v669
    %v672 = vmul.f32 1.0, %v671
    %v673 = vrcp.pop %v670
    %v674 = vmul.f32 1.0, %v673
    %675 = vrot.lane.b32.xlu0 %v386, 16
    %v676 = vpop.permute.xlu0 %675
    %677 = vrot.lane.b32.xlu0 %v387, 16
    %v678 = vpop.permute.xlu0 %677
    %v681 = vsel %vm26, %v672, %v676
    %v682 = vsel %vm26, %v674, %v678
    %vm683 = vcmask 162816
    %684 = vst.msk [vmem:[#allocation4] sm:$0xff] %vm683, %v681
    %685 = vst.msk [vmem:[#allocation4 + $0x8] sm:$0xff] %vm683, %v682
    // Predicated region
    $region14: #{tpu_custom_call.1} parent=1 // pred_check
      _
    $region15: #{tpu_custom_call.1} parent=1 // pred_check_branch
      %687 = sbr.rel (0) target = $region17
    $region16: #{tpu_custom_call.1} parent=1 // pred_region
      %s689 = ssub.s32 32, 32
      %690 = vsyncadd [#allocation3], %s689
      %s692 = sshll.u32 [#allocation2], 4
      %s693 = int_to_ptr.vmem [resolvable:$true] %s692
      %695 = dma.vmem_to_hbm [thread:$0]  %s693, 32, %s3, [#allocation3]
    $region17: #{tpu_custom_call.1} parent=1 // pred_fallthru
      _
    // Predicated region
    $region18: #{tpu_custom_call.1} parent=1 // pred_check
      _
    $region19: #{tpu_custom_call.1} parent=1 // pred_check_branch
      %697 = sbr.rel (0) target = $region21
    $region20: #{tpu_custom_call.1} parent=1 // pred_region
      %s699 = ssub.s32 256, 256
      %700 = vsyncadd [#allocation5], %s699
      %s701 = sshll.u32 [#allocation4], 4
      %s702 = int_to_ptr.vmem [resolvable:$true] %s701
      %707 = dma.vmem_to_hbm [thread:$0]  %s702, 256, %s4, [#allocation5], 128, 128, 8
    $region21: #{tpu_custom_call.1} parent=1 // pred_fallthru
      _
    // Predicated region
    $region22: #{tpu_custom_call.1} parent=1 // pred_check
      _
    $region23: #{tpu_custom_call.1} parent=1 // pred_check_branch
      %709 = sbr.rel (0) target = $region25
    $region24: #{tpu_custom_call.1} parent=1 // pred_region
      %710 = dma.done [#allocation3], 32
    $region25: #{tpu_custom_call.1} parent=1 // pred_fallthru
      _
    // Predicated region
    $region26: #{tpu_custom_call.1} parent=1 // pred_check
      _
    $region27: #{tpu_custom_call.1} parent=1 // pred_check_branch
      %712 = sbr.rel (0) target = $region29
    $region28: #{tpu_custom_call.1} parent=1 // pred_region
      %713 = dma.done [#allocation5], 256
    $region29: #{tpu_custom_call.1} parent=1 // pred_fallthru
      _
    %714 = vsyncpa [#allocation3], 1
    %715 = vsyncpa [#allocation5], 1

</llo_original>
